<compile_context>
chip_gen: v7x
topology: tpu7x:2x2x1
jax: 0.10.0
libtpu: 0.0.40
codegen_flags: <defaults>
</compile_context>

<pallas_src>
import functools

import numpy as np
import jax
import jax.numpy as jnp
from jax.experimental import pallas as pl
from jax.experimental.pallas import tpu as pltpu


# ----------------------------------------------------------------------------
# Pallas kernel
# ----------------------------------------------------------------------------
def _addjust_kernel(hid_ref, emb_ref, wh_ref, we_ref, o_ref, *, inv_t):
  # hid_ref: (1, T, H)   emb_ref: (1, K, E)
  # wh_ref:  (H, E)      we_ref:  (E, E)      o_ref: (1, K, E)
  x = hid_ref[0]                                             # (T, H)
  mean = jnp.sum(x, axis=0, keepdims=True) * inv_t           # (1, H)
  mean_proj = jnp.dot(mean, wh_ref[...],
                      preferred_element_type=jnp.float32)    # (1, E)
  emb_proj = jnp.dot(emb_ref[0], we_ref[...],
                     preferred_element_type=jnp.float32)     # (K, E)
  o_ref[0] = (emb_proj + mean_proj).astype(o_ref.dtype)      # bcast over K


# ----------------------------------------------------------------------------
# Wrapper
# ----------------------------------------------------------------------------
def addjust_forward(input_hidden, prob_emb, weight):
  """ADDJUST.forward.

  input_hidden: (B, T, H) f32
  prob_emb:     (B, K, E) f32
  weight:       (E, H+E) f32  -- torch nn.Linear weight (out_features, in_features)
  returns:      (B, K, E) f32
  """
  B, T, H = input_hidden.shape
  Bk, K, E = prob_emb.shape
  assert Bk == B
  assert weight.shape == (E, H + E)

  # y = can @ weight.T ; split weight.T = [W_h ; W_e] along the input axis.
  wt = weight.T                                              # (H+E, E)
  w_h = wt[:H]                                               # (H, E)
  w_e = wt[H:]                                               # (E, E)

  kern = functools.partial(_addjust_kernel, inv_t=1.0 / T)
  return pl.pallas_call(
      kern,
      out_shape=jax.ShapeDtypeStruct((B, K, E), input_hidden.dtype),
      grid=(B,),
      in_specs=[
          pl.BlockSpec((1, T, H), lambda b: (b, 0, 0)),
          pl.BlockSpec((1, K, E), lambda b: (b, 0, 0)),
          pl.BlockSpec((H, E), lambda b: (0, 0)),
          pl.BlockSpec((E, E), lambda b: (0, 0)),
      ],
      out_specs=pl.BlockSpec((1, K, E), lambda b: (b, 0, 0)),
      # Batch axis is independent -> "parallel" so v7x's two TensorCores split it.
      # No vmem_limit override (working set is a few hundred KiB).
      compiler_params=pltpu.CompilerParams(
          dimension_semantics=("parallel",)),
  )(input_hidden, prob_emb, w_h, w_e)


# ----------------------------------------------------------------------------
# Pure-JAX reference (mirrors the PyTorch forward literally)
# ----------------------------------------------------------------------------
def reference_forward(input_hidden, prob_emb, weight):
  B, T, H = input_hidden.shape
  _, K, E = prob_emb.shape
  mean = jnp.mean(input_hidden, axis=1)                       # (B, H)
  x = jnp.broadcast_to(mean[:, None, :], (B, K, H))           # expand
  can = jnp.concatenate([x, prob_emb], axis=2)                # (B, K, H+E)
  return jnp.einsum("bkf,ef->bke", can, weight,
                    precision=jax.lax.Precision.HIGHEST)      # Linear, no bias


if __name__ == "__main__":
  key = jax.random.PRNGKey(0)
  k1, k2, k3 = jax.random.split(key, 3)

  # Small shapes consistent with the module:
  #   batch=2, seq len T=8, hidden_units=32, top_k_num=4, embedding_size=32
  B, T, H = 2, 8, 32
  K, E = 4, 32

  input_hidden = jax.random.normal(k1, (B, T, H), jnp.float32)
  prob_emb = jax.random.normal(k2, (B, K, E), jnp.float32)
  weight = jax.random.normal(k3, (E, H + E), jnp.float32) / np.sqrt(H + E)

  out = jax.block_until_ready(addjust_forward(input_hidden, prob_emb, weight))
  assert out.shape == (B, K, E)

  ref = jax.block_until_ready(reference_forward(input_hidden, prob_emb, weight))
  np.testing.assert_allclose(np.asarray(out), np.asarray(ref),
                             rtol=2e-3, atol=2e-3)

  print("KERNEL_OK")
</pallas_src>

<mosaic_0001>
module attributes {stable_mosaic.version = 11 : i64} {
  func.func @_addjust_kernel(%arg0: i32, %arg1: memref<1x8x32xf32, #tpu.memory_space<vmem>>, %arg2: memref<1x4x32xf32, #tpu.memory_space<vmem>>, %arg3: memref<32x32xf32, #tpu.memory_space<vmem>>, %arg4: memref<32x32xf32, #tpu.memory_space<vmem>>, %arg5: memref<1x4x32xf32, #tpu.memory_space<vmem>>) attributes {dimension_semantics = [#tpu.dimension_semantics<parallel>], iteration_bounds = array<i64: 2>, scalar_prefetch = 0 : i64, scratch_operands = 0 : i64, tpu.core_type = #tpu.core_type<tc>, window_params = [{transform_indices = @transform_0, window_bounds = array<i64: 1, 8, 32>}, {transform_indices = @transform_1, window_bounds = array<i64: 1, 4, 32>}, {pipeline_mode = #tpu.pipeline_mode<synchronous>, transform_indices = @transform_2, window_bounds = array<i64: 32, 32>}, {pipeline_mode = #tpu.pipeline_mode<synchronous>, transform_indices = @transform_3, window_bounds = array<i64: 32, 32>}, {transform_indices = @transform_4, window_bounds = array<i64: 1, 4, 32>}]} {
    %c0 = arith.constant 0 : index
    %c0_0 = arith.constant 0 : index
    %c0_1 = arith.constant 0 : index
    %0 = vector.load %arg1[%c0, %c0_0, %c0_1] : memref<1x8x32xf32, #tpu.memory_space<vmem>>, vector<1x8x32xf32>
    %1 = vector.shape_cast %0 : vector<1x8x32xf32> to vector<8x32xf32>
    %cst = arith.constant dense<0.000000e+00> : vector<32xf32>
    %2 = vector.multi_reduction <add>, %1, %cst [0] : vector<8x32xf32> to vector<32xf32>
    %3 = vector.shape_cast %2 : vector<32xf32> to vector<1x32xf32>
    %cst_2 = arith.constant 1.250000e-01 : f32
    %4 = vector.broadcast %cst_2 : f32 to vector<1x32xf32>
    %5 = arith.mulf %3, %4 : vector<1x32xf32>
    %c0_3 = arith.constant 0 : index
    %c0_4 = arith.constant 0 : index
    %6 = vector.load %arg3[%c0_3, %c0_4] : memref<32x32xf32, #tpu.memory_space<vmem>>, vector<32x32xf32>
    %cst_5 = arith.constant dense<0.000000e+00> : vector<1x32xf32>
    %7 = tpu.matmul %5, %6, %cst_5 {dimension_numbers = #tpu.dot_dimension_numbers<[1], [0], [0], [1], [0, 0, 1, 1], [], []>} : vector<1x32xf32>, vector<32x32xf32>, vector<1x32xf32> -> vector<1x32xf32>
    %c0_6 = arith.constant 0 : index
    %c0_7 = arith.constant 0 : index
    %c0_8 = arith.constant 0 : index
    %8 = vector.load %arg2[%c0_6, %c0_7, %c0_8] : memref<1x4x32xf32, #tpu.memory_space<vmem>>, vector<1x4x32xf32>
    %9 = vector.shape_cast %8 : vector<1x4x32xf32> to vector<4x32xf32>
    %c0_9 = arith.constant 0 : index
    %c0_10 = arith.constant 0 : index
    %10 = vector.load %arg4[%c0_9, %c0_10] : memref<32x32xf32, #tpu.memory_space<vmem>>, vector<32x32xf32>
    %cst_11 = arith.constant dense<0.000000e+00> : vector<4x32xf32>
    %11 = tpu.matmul %9, %10, %cst_11 {dimension_numbers = #tpu.dot_dimension_numbers<[1], [0], [0], [1], [0, 0, 1, 1], [], []>} : vector<4x32xf32>, vector<32x32xf32>, vector<4x32xf32> -> vector<4x32xf32>
    %12 = vector.broadcast %7 : vector<1x32xf32> to vector<4x32xf32>
    %13 = arith.addf %11, %12 : vector<4x32xf32>
    %c0_12 = arith.constant 0 : index
    %c0_13 = arith.constant 0 : index
    %c0_14 = arith.constant 0 : index
    %14 = vector.load %arg5[%c0_12, %c0_13, %c0_14] : memref<1x4x32xf32, #tpu.memory_space<vmem>>, vector<1x4x32xf32>
    %15 = vector.shape_cast %14 : vector<1x4x32xf32> to vector<4x32xf32>
    %16 = vector.shape_cast %13 : vector<4x32xf32> to vector<1x4x32xf32>
    tpu.vector_store %arg5[%c0_12, %c0_13, %c0_14], %16 {strides = array<i32>} : memref<1x4x32xf32, #tpu.memory_space<vmem>>, vector<1x4x32xf32>,
    return
  }
  func.func @transform_0(%arg0: i32) -> (i32, i32, i32) {
    %c0_i32 = arith.constant 0 : i32
    %c0_i32_0 = arith.constant 0 : i32
    %c0_i32_1 = arith.constant 0 : i32
    return %arg0, %c0_i32, %c0_i32_0 : i32, i32, i32
  }
  func.func @transform_1(%arg0: i32) -> (i32, i32, i32) {
    %c0_i32 = arith.constant 0 : i32
    %c0_i32_0 = arith.constant 0 : i32
    %c0_i32_1 = arith.constant 0 : i32
    return %arg0, %c0_i32, %c0_i32_0 : i32, i32, i32
  }
  func.func @transform_2(%arg0: i32) -> (i32, i32) {
    %c0_i32 = arith.constant 0 : i32
    %c0_i32_0 = arith.constant 0 : i32
    %c0_i32_1 = arith.constant 0 : i32
    return %c0_i32, %c0_i32_0 : i32, i32
  }
  func.func @transform_3(%arg0: i32) -> (i32, i32) {
    %c0_i32 = arith.constant 0 : i32
    %c0_i32_0 = arith.constant 0 : i32
    %c0_i32_1 = arith.constant 0 : i32
    return %c0_i32, %c0_i32_0 : i32, i32
  }
  func.func @transform_4(%arg0: i32) -> (i32, i32, i32) {
    %c0_i32 = arith.constant 0 : i32
    %c0_i32_0 = arith.constant 0 : i32
    %c0_i32_1 = arith.constant 0 : i32
    return %arg0, %c0_i32, %c0_i32_0 : i32, i32, i32
  }
}

</mosaic_0001>

<llo_original>
// kernel: tpu_custom_call.1
$region0: #{tpu_custom_call.1}
  #allocation0 [shape = 'u32[]', space=smem, size = 0x4, offset = 0x4, fixed_abs, tag = 'smem constant byte address 0x4 - core index']
  #allocation1 [shape = 'u32[144,128]{1,0:T(1,128)}', space=vmem, size = 0x12000, scoped, tag = 'internal scratch']
  %s0 = inlined_call_operand.hbm [shape: f32[2,8,32], index: 0, kind: input, shape index: {}]
  %s1 = inlined_call_operand.hbm [shape: f32[2,4,32], index: 1, kind: input, shape index: {}]
  %s2 = inlined_call_operand.hbm [shape: f32[32,32], index: 2, kind: input, shape index: {}]
  %s3 = inlined_call_operand.hbm [shape: f32[32,32], index: 3, kind: input, shape index: {}]
  %s4 = inlined_call_operand.hbm [shape: f32[2,4,32], index: 4, kind: output, shape index: {}]
  %s5 = sld [smem:[#allocation0]]
  $region65: #{tpu_custom_call.1} parent=0
    _
  %s7 = ssub.s32 1, %s5
  %s8 = scalar_select 0, %s7, %s5
  $region1: #{tpu_custom_call.1} parent=0
    #allocation2 [shape = 'u8[8192]{0}', space=vmem, size = 0x2000, scoped, tag = 'input window, operand 0']
    #allocation3 [shape = 's32[2]{0}', space=sflag, size = 0x8, scoped, tag = 'scoped memory for tpu_custom_call.1']
    #allocation4 [shape = 's32[2]{0}', space=sflag, size = 0x8, scoped, tag = 'scoped memory for tpu_custom_call.1']
    #allocation5 [shape = 'u8[4096]{0}', space=vmem, size = 0x1000, scoped, tag = 'input window, operand 1']
    #allocation6 [shape = 's32[2]{0}', space=sflag, size = 0x8, scoped, tag = 'scoped memory for tpu_custom_call.1']
    #allocation7 [shape = 'u8[16384]{0}', space=vmem, size = 0x4000, scoped, tag = 'input window, operand 2, single buffered']
    #allocation8 [shape = 'u8[16384]{0}', space=vmem, size = 0x4000, scoped, tag = 'input window, operand 3, single buffered']
    #allocation9 [shape = 's32[1]{0}', space=sflag, size = 0x4, scoped, tag = 'scoped memory for tpu_custom_call.1']
    #allocation10 [shape = 'u8[4096]{0}', space=vmem, size = 0x1000, scoped, tag = 'output window, operand 0']
    %9 = vsyncpa [#allocation3], 0
    %s10 = scalar_lea.sflag [#allocation3], 1
    %11 = vsyncpa %s10, 0
    %12 = vsyncpa [#allocation6], 0
    %s13 = scalar_lea.sflag [#allocation6], 1
    %14 = vsyncpa %s13, 0
    %15 = vsyncpa [#allocation9], 0
    %16 = vsyncpa [#allocation4], 0
    %s17 = scalar_lea.sflag [#allocation4], 1
    %18 = vsyncpa %s17, 0
    loop: start=0, step=1, limit=4
    $region2: #{tpu_custom_call.1} parent=1 // loop_pre_header
      _
    $region3: #{tpu_custom_call.1} parent=1 // loop_header
      %s20 = sphi 0, %s24
      %p21 = scmp.ge.s32.totalorder %s20, 4
      %s30 = sphi 0, %s32
      %s33 = sphi 0, %s30
      %s34 = sphi 0, %s33
      %s50 = sphi 0, %s34
      %s56 = sphi 0, %s58
      %s59 = sphi 0, %s56
      %s60 = sphi 0, %s59
      %s76 = sphi 0, %s60
      %s80 = sphi 0, %s80
      %s82 = sphi 0, %s80
      %s83 = sphi 0, %s82
      %s97 = sphi 0, %s83
      %s101 = sphi 0, %s101
      %s103 = sphi 0, %s101
      %s104 = sphi 0, %s103
      %s118 = sphi 0, %s104
      %s124 = sphi 0, %s126
      %s127 = sphi 0, %s124
      %s128 = sphi 0, %s127
      %s144 = sphi 0, %s128
    $region4: #{tpu_custom_call.1} parent=1 // loop_header_branch
      %23 = sbr.rel (%p21) target = $region8
    $region5: #{tpu_custom_call.1} parent=1 // loop_body
      %s25 = ssub.s32 %s20, 1
      %s26 = ssub.s32 %s20, 2
      %s27 = sadd.s32 %s20, 1
      %s28 = ssub.s32 %s20, %s27
      %p29 = scmp.eq.s32.totalorder %s28, 0
      %s31 = sadd.s32 %s30, 1
      %s32 = scalar_select %p29, %s30, %s31
      %p35 = pneg %p29
      %p36 = scmp.eq.s32.totalorder %s20, 1
      %p37 = por %p35, %p36
      %p38 = scmp.ne.s32.totalorder %s30, %s33
      %p39 = scmp.eq.s32.totalorder %s20, 0
      %p40 = por %p38, %p39
      %p41 = scmp.ne.s32.totalorder %s30, %s33
      %p42 = scmp.eq.s32.totalorder %s25, 1
      %p43 = por %p41, %p42
      %p44 = scmp.ne.s32.totalorder %s33, %s34
      %p45 = scmp.eq.s32.totalorder %s25, 0
      %p46 = por %p44, %p45
      %p47 = scmp.ne.s32.totalorder %s33, %s34
      %p48 = scmp.eq.s32.totalorder %s26, 1
      %p49 = por %p47, %p48
      %p51 = scmp.ne.s32.totalorder %s34, %s50
      %p52 = scmp.eq.s32.totalorder %s26, 0
      %p53 = por %p51, %p52
      %s54 = ssub.s32 %s20, %s27
      %p55 = scmp.eq.s32.totalorder %s54, 0
      %s57 = sadd.s32 %s56, 1
      %s58 = scalar_select %p55, %s56, %s57
      %p61 = pneg %p55
      %p62 = scmp.eq.s32.totalorder %s20, 1
      %p63 = por %p61, %p62
      %p64 = scmp.ne.s32.totalorder %s56, %s59
      %p65 = scmp.eq.s32.totalorder %s20, 0
      %p66 = por %p64, %p65
      %p67 = scmp.ne.s32.totalorder %s56, %s59
      %p68 = scmp.eq.s32.totalorder %s25, 1
      %p69 = por %p67, %p68
      %p70 = scmp.ne.s32.totalorder %s59, %s60
      %p71 = scmp.eq.s32.totalorder %s25, 0
      %p72 = por %p70, %p71
      %p73 = scmp.ne.s32.totalorder %s59, %s60
      %p74 = scmp.eq.s32.totalorder %s26, 1
      %p75 = por %p73, %p74
      %p77 = scmp.ne.s32.totalorder %s60, %s76
      %p78 = scmp.eq.s32.totalorder %s26, 0
      %p79 = por %p77, %p78
      %s81 = sadd.s32 %s80, 1
      %p84 = scmp.eq.s32.totalorder %s20, 1
      %p85 = scmp.ne.s32.totalorder %s80, %s82
      %p86 = scmp.eq.s32.totalorder %s20, 0
      %p87 = por %p85, %p86
      %p88 = scmp.ne.s32.totalorder %s80, %s82
      %p89 = scmp.eq.s32.totalorder %s25, 1
      %p90 = por %p88, %p89
      %p91 = scmp.ne.s32.totalorder %s82, %s83
      %p92 = scmp.eq.s32.totalorder %s25, 0
      %p93 = por %p91, %p92
      %p94 = scmp.ne.s32.totalorder %s82, %s83
      %p95 = scmp.eq.s32.totalorder %s26, 1
      %p96 = por %p94, %p95
      %p98 = scmp.ne.s32.totalorder %s83, %s97
      %p99 = scmp.eq.s32.totalorder %s26, 0
      %p100 = por %p98, %p99
      %s102 = sadd.s32 %s101, 1
      %p105 = scmp.eq.s32.totalorder %s20, 1
      %p106 = scmp.ne.s32.totalorder %s101, %s103
      %p107 = scmp.eq.s32.totalorder %s20, 0
      %p108 = por %p106, %p107
      %p109 = scmp.ne.s32.totalorder %s101, %s103
      %p110 = scmp.eq.s32.totalorder %s25, 1
      %p111 = por %p109, %p110
      %p112 = scmp.ne.s32.totalorder %s103, %s104
      %p113 = scmp.eq.s32.totalorder %s25, 0
      %p114 = por %p112, %p113
      %p115 = scmp.ne.s32.totalorder %s103, %s104
      %p116 = scmp.eq.s32.totalorder %s26, 1
      %p117 = por %p115, %p116
      %p119 = scmp.ne.s32.totalorder %s104, %s118
      %p120 = scmp.eq.s32.totalorder %s26, 0
      %p121 = por %p119, %p120
      %s122 = ssub.s32 %s20, %s27
      %p123 = scmp.eq.s32.totalorder %s122, 0
      %s125 = sadd.s32 %s124, 1
      %s126 = scalar_select %p123, %s124, %s125
      %p129 = pneg %p123
      %p130 = scmp.eq.s32.totalorder %s20, 1
      %p131 = por %p129, %p130
      %p132 = scmp.ne.s32.totalorder %s124, %s127
      %p133 = scmp.eq.s32.totalorder %s20, 0
      %p134 = por %p132, %p133
      %p135 = scmp.ne.s32.totalorder %s124, %s127
      %p136 = scmp.eq.s32.totalorder %s25, 1
      %p137 = por %p135, %p136
      %p138 = scmp.ne.s32.totalorder %s127, %s128
      %p139 = scmp.eq.s32.totalorder %s25, 0
      %p140 = por %p138, %p139
      %p141 = scmp.ne.s32.totalorder %s127, %s128
      %p142 = scmp.eq.s32.totalorder %s26, 1
      %p143 = por %p141, %p142
      %p145 = scmp.ne.s32.totalorder %s128, %s144
      %p146 = scmp.eq.s32.totalorder %s26, 0
      %p147 = por %p145, %p146
      %p148 = scmp.le.s32.totalorder 1, %s20
      %p149 = scmp.lt.s32.totalorder %s20, 3
      %p150 = pnand %p148, %p149
      %p151 = pneg %p150
      // Predicated region
      $region9: #{tpu_custom_call.1} parent=5 // pred_check
        _
      $region10: #{tpu_custom_call.1} parent=5 // pred_check_branch
        %153 = sbr.rel (%p150) target = $region12
      $region11: #{tpu_custom_call.1} parent=5 // pred_region
        %s154 = ssub.s32 %s20, 1
        // Predicated region
        $region13: #{tpu_custom_call.1} parent=11 // pred_check
          %p155 = pneg %p93
        $region14: #{tpu_custom_call.1} parent=11 // pred_check_branch
          %157 = sbr.rel (%p155) target = $region16
        $region15: #{tpu_custom_call.1} parent=11 // pred_region
          %s159 = ssub.s32 512, 512
          %160 = vsyncadd [#allocation6], %s159
          %s161 = sshll.u32 [#allocation7], 4
          %s162 = int_to_ptr.vmem [resolvable:$true] %s161
          %167 = dma.hbm_to_vmem [thread:$0]  %s2, 512, %s162, [#allocation6], 128, 128, 8
        $region16: #{tpu_custom_call.1} parent=11 // pred_fallthru
          _
        // Predicated region
        $region17: #{tpu_custom_call.1} parent=11 // pred_check
          %p168 = pneg %p114
        $region18: #{tpu_custom_call.1} parent=11 // pred_check_branch
          %170 = sbr.rel (%p168) target = $region20
        $region19: #{tpu_custom_call.1} parent=11 // pred_region
          %s172 = ssub.s32 512, 512
          %173 = vsyncadd [#allocation9], %s172
          %s174 = sshll.u32 [#allocation8], 4
          %s175 = int_to_ptr.vmem [resolvable:$true] %s174
          %180 = dma.hbm_to_vmem [thread:$0]  %s3, 512, %s175, [#allocation9], 128, 128, 8
        $region20: #{tpu_custom_call.1} parent=11 // pred_fallthru
          _
      $region12: #{tpu_custom_call.1} parent=5 // pred_fallthru
        _
      %p181 = scmp.lt.s32.totalorder %s20, 2
      // Predicated region
      $region21: #{tpu_custom_call.1} parent=5 // pred_check
        %p182 = pneg %p181
      $region22: #{tpu_custom_call.1} parent=5 // pred_check_branch
        %184 = sbr.rel (%p182) target = $region24
      $region23: #{tpu_custom_call.1} parent=5 // pred_region
        // Predicated region
        $region25: #{tpu_custom_call.1} parent=23 // pred_check
          %p185 = pneg %p40
        $region26: #{tpu_custom_call.1} parent=23 // pred_check_branch
          %187 = sbr.rel (%p185) target = $region28
        $region27: #{tpu_custom_call.1} parent=23 // pred_region
          %s188 = sand.u32 %s30, 1
          %s189 = scalar_lea.sflag [#allocation3], %s188
          %s190 = sand.u32 %s30, 1
          %s191 = smul.addr %s190, 8
          %s192 = scalar_lea.vmem [#allocation2], %s191
          %s194 = ssub.s32 128, 128
          %195 = vsyncadd %s189, %s194
          %s196 = smul.addr %s20, 128
          %s197 = scalar_lea.hbm %s0, %s196
          %s199 = sshll.u32 %s192, 4
          %s200 = int_to_ptr.vmem [resolvable:$true] %s199
          %202 = dma.hbm_to_vmem [thread:$0]  %s197, 128, %s200, %s189
        $region28: #{tpu_custom_call.1} parent=23 // pred_fallthru
          _
        // Predicated region
        $region29: #{tpu_custom_call.1} parent=23 // pred_check
          %p203 = pneg %p66
        $region30: #{tpu_custom_call.1} parent=23 // pred_check_branch
          %205 = sbr.rel (%p203) target = $region32
        $region31: #{tpu_custom_call.1} parent=23 // pred_region
          %s206 = sand.u32 %s20, 1
          %s207 = scalar_lea.sflag [#allocation6], %s206
          %s208 = sand.u32 %s56, 1
          %s209 = smul.addr %s208, 4
          %s210 = scalar_lea.vmem [#allocation5], %s209
          %s212 = ssub.s32 64, 64
          %213 = vsyncadd %s207, %s212
          %s214 = smul.addr %s20, 64
          %s215 = scalar_lea.hbm %s1, %s214
          %s217 = sshll.u32 %s210, 4
          %s218 = int_to_ptr.vmem [resolvable:$true] %s217
          %220 = dma.hbm_to_vmem [thread:$0]  %s215, 64, %s218, %s207
        $region32: #{tpu_custom_call.1} parent=23 // pred_fallthru
          _
      $region24: #{tpu_custom_call.1} parent=5 // pred_fallthru
        _
      %p221 = scmp.le.s32.totalorder 1, %s20
      %p222 = scmp.lt.s32.totalorder %s20, 3
      %p223 = pnand %p221, %p222
      %p224 = pneg %p223
      // Predicated region
      $region33: #{tpu_custom_call.1} parent=5 // pred_check
        _
      $region34: #{tpu_custom_call.1} parent=5 // pred_check_branch
        %226 = sbr.rel (%p223) target = $region36
      $region35: #{tpu_custom_call.1} parent=5 // pred_region
        %s227 = ssub.s32 %s20, 1
        %s228 = sand.u32 %s33, 1
        %s229 = scalar_lea.sflag [#allocation3], %s228
        %s230 = sand.u32 %s33, 1
        %s231 = smul.addr %s230, 8
        %s232 = scalar_lea.vmem [#allocation2], %s231
        // Predicated region
        $region37: #{tpu_custom_call.1} parent=35 // pred_check
          %p233 = pneg %p46
        $region38: #{tpu_custom_call.1} parent=35 // pred_check_branch
          %235 = sbr.rel (%p233) target = $region40
        $region39: #{tpu_custom_call.1} parent=35 // pred_region
          %236 = dma.done %s229, 128
        $region40: #{tpu_custom_call.1} parent=35 // pred_fallthru
          _
        %s237 = sand.u32 %s25, 1
        %s238 = scalar_lea.sflag [#allocation6], %s237
        %s239 = sand.u32 %s59, 1
        %s240 = smul.addr %s239, 4
        %s241 = scalar_lea.vmem [#allocation5], %s240
        // Predicated region
        $region41: #{tpu_custom_call.1} parent=35 // pred_check
          %p242 = pneg %p72
        $region42: #{tpu_custom_call.1} parent=35 // pred_check_branch
          %244 = sbr.rel (%p242) target = $region44
        $region43: #{tpu_custom_call.1} parent=35 // pred_region
          %245 = dma.done %s238, 64
        $region44: #{tpu_custom_call.1} parent=35 // pred_fallthru
          _
        // Predicated region
        $region45: #{tpu_custom_call.1} parent=35 // pred_check
          %p246 = pneg %p93
        $region46: #{tpu_custom_call.1} parent=35 // pred_check_branch
          %248 = sbr.rel (%p246) target = $region48
        $region47: #{tpu_custom_call.1} parent=35 // pred_region
          %249 = dma.done [#allocation6], 512
        $region48: #{tpu_custom_call.1} parent=35 // pred_fallthru
          _
        // Predicated region
        $region49: #{tpu_custom_call.1} parent=35 // pred_check
          %p250 = pneg %p114
        $region50: #{tpu_custom_call.1} parent=35 // pred_check_branch
          %252 = sbr.rel (%p250) target = $region52
        $region51: #{tpu_custom_call.1} parent=35 // pred_region
          %253 = dma.done [#allocation9], 512
        $region52: #{tpu_custom_call.1} parent=35 // pred_fallthru
          _
        %s254 = sand.u32 %s33, 1
        %s255 = scalar_lea.sflag [#allocation3], %s254
        %s256 = sand.u32 %s33, 1
        %s257 = smul.addr %s256, 8
        %s258 = scalar_lea.vmem [#allocation2], %s257
        %p259 = pneg %p46
        %p260 = pneg %p43
        %s261 = sand.u32 %s25, 1
        %s262 = scalar_lea.sflag [#allocation6], %s261
        %s263 = sand.u32 %s59, 1
        %s264 = smul.addr %s263, 4
        %s265 = scalar_lea.vmem [#allocation5], %s264
        %p266 = pneg %p72
        %p267 = pneg %p69
        %p268 = pneg %p93
        %p269 = pneg %p90
        %p270 = pneg %p114
        %p271 = pneg %p111
        %p272 = pneg %p140
        %p273 = pneg %p137
        %s274 = sand.u32 %s127, 1
        %s275 = scalar_lea.sflag [#allocation4], %s274
        %s276 = sand.u32 %s127, 1
        %s277 = smul.addr %s276, 4
        %s278 = scalar_lea.vmem [#allocation10], %s277
        %v279 = vld [vmem:[%s232] sm:$0xff]
        %vm280 = vcmask 261120
        %v281 = vsel %vm280, %v279, 0.0
        %v282 = vrot.slane %v281, 4
        %v283 = vadd.f32 %v281, %v282
        %v284 = vrot.slane %v283, 2
        %v285 = vadd.f32 %v283, %v284
        %v286 = vrot.slane %v285, 1
        %v287 = vadd.f32 %v285, %v286
        %v288 = vmul.f32 %v287, 0.125
        %v289 = vld [vmem:[#allocation7] sm:$0xff]
        %v290 = vld [vmem:[#allocation7 + $0x8] sm:$0xff]
        %v291 = vld [vmem:[#allocation7 + $0x10] sm:$0xff]
        %v292 = vld [vmem:[#allocation7 + $0x18] sm:$0xff]
        %v294 = vsel %vm280, %v288, 0
        %296 = vmatprep.subr.mxu0 0.0
        %297 = vmatpush1.msra.mxu0 %v289
        %298 = vmatprep.subr.mxu0 0.0
        %299 = vmatpush1.msra.mxu0 %v290
        %300 = vmatprep.subr.mxu0 0.0
        %301 = vmatpush1.msra.mxu0 %v291
        %302 = vmatprep.subr.mxu0 0.0
        %303 = vmatpush1.msra.mxu0 %v292
        %304 = vmatprep.subr.mxu0 0.0
        %305 = vmatpush1.msra.mxu0 0.0
        %306 = vmatprep.subr.mxu0 0.0
        %307 = vmatpush1.msra.mxu0 0.0
        %308 = vmatprep.subr.mxu0 0.0
        %309 = vmatpush1.msra.mxu0 0.0
        %310 = vmatprep.subr.mxu0 0.0
        %311 = vmatpush1.msra.mxu0 0.0
        %312 = vmatprep.subr.mxu0 0.0
        %313 = vmatpush1.msra.mxu0 0.0
        %314 = vmatprep.subr.mxu0 0.0
        %315 = vmatpush1.msra.mxu0 0.0
        %316 = vmatprep.subr.mxu0 0.0
        %317 = vmatpush1.msra.mxu0 0.0
        %318 = vmatprep.subr.mxu0 0.0
        %319 = vmatpush1.msra.mxu0 0.0
        %320 = vmatprep.subr.mxu0 0.0
        %321 = vmatpush1.msra.mxu0 0.0
        %322 = vmatprep.subr.mxu0 0.0
        %323 = vmatpush1.msra.mxu0 0.0
        %324 = vmatprep.subr.mxu0 0.0
        %325 = vmatpush1.msra.mxu0 0.0
        %326 = vmatprep.subr.mxu0 0.0
        %327 = vmatpush1.msra.mxu0 0.0
        %328 = vmatprep.subr.mxu0 0.0
        %329 = vmatpush1.msra.mxu0 0.0
        %330 = vmatprep.subr.mxu0 0.0
        %331 = vmatpush1.msra.mxu0 0.0
        %332 = vmatprep.subr.mxu0 0.0
        %333 = vmatpush1.msra.mxu0 0.0
        %334 = vmatprep.subr.mxu0 0.0
        %335 = vmatpush1.msra.mxu0 0.0
        %336 = vmatprep.subr.mxu0 0.0
        %337 = vmatpush1.msra.mxu0 0.0
        %338 = vmatprep.subr.mxu0 0.0
        %339 = vmatpush1.msra.mxu0 0.0
        %340 = vmatprep.subr.mxu0 0.0
        %341 = vmatpush1.msra.mxu0 0.0
        %342 = vmatprep.subr.mxu0 0.0
        %343 = vmatpush1.msra.mxu0 0.0
        %344 = vmatprep.subr.mxu0 0.0
        %345 = vmatpush1.msra.mxu0 0.0
        %346 = vmatprep.subr.mxu0 0.0
        %347 = vmatpush1.msra.mxu0 0.0
        %348 = vmatprep.subr.mxu0 0.0
        %349 = vmatpush1.msra.mxu0 0.0
        %350 = vmatprep.subr.mxu0 0.0
        %351 = vmatpush1.msra.mxu0 0.0
        %352 = vmatprep.subr.mxu0 0.0
        %353 = vmatpush1.msra.mxu0 0.0
        %354 = vmatprep.subr.mxu0 0.0
        %355 = vmatpush1.msra.mxu0 0.0
        %356 = vmatprep.subr.mxu0 0.0
        %357 = vmatpush1.msra.mxu0 0.0
        %358 = vmatprep.subr.mxu0 0.0
        %359 = vmatpush1.msra.mxu0 0.0
        %360 = vmatprep.mubr.f32.mxu0 0.0
        %361 = vmatmul.mubr.f32.gmra.mrb[0].mxu0 %v294
        %v362 = vpop.f32.mrb[0].mxu0
        %v363 = vadd.f32 0.0, %v362
        %v364 = vpop.f32.mrb[0].mxu0
        %365 = vdwg.mxu0
        %v366 = vld [vmem:[%s241] sm:$0xf]
        %v367 = vld [vmem:[#allocation8] sm:$0xff]
        %v368 = vld [vmem:[#allocation8 + $0x8] sm:$0xff]
        %v369 = vld [vmem:[#allocation8 + $0x10] sm:$0xff]
        %v370 = vld [vmem:[#allocation8 + $0x18] sm:$0xff]
        %v371 = vlaneseq
        %v372 = vshrl.u32 %v371, 7
        %v373 = vsub.s32 0, %v372
        %v374 = vrot.slane %v363, %v373
        %v376 = vsel %vm280, %v366, 0
        %378 = vmatprep.subr.mxu0 0.0
        %379 = vmatpush1.msra.mxu0 %v367
        %380 = vmatprep.subr.mxu0 0.0
        %381 = vmatpush1.msra.mxu0 %v368
        %382 = vmatprep.subr.mxu0 0.0
        %383 = vmatpush1.msra.mxu0 %v369
        %384 = vmatprep.subr.mxu0 0.0
        %385 = vmatpush1.msra.mxu0 %v370
        %386 = vmatprep.subr.mxu0 0.0
        %387 = vmatpush1.msra.mxu0 0.0
        %388 = vmatprep.subr.mxu0 0.0
        %389 = vmatpush1.msra.mxu0 0.0
        %390 = vmatprep.subr.mxu0 0.0
        %391 = vmatpush1.msra.mxu0 0.0
        %392 = vmatprep.subr.mxu0 0.0
        %393 = vmatpush1.msra.mxu0 0.0
        %394 = vmatprep.subr.mxu0 0.0
        %395 = vmatpush1.msra.mxu0 0.0
        %396 = vmatprep.subr.mxu0 0.0
        %397 = vmatpush1.msra.mxu0 0.0
        %398 = vmatprep.subr.mxu0 0.0
        %399 = vmatpush1.msra.mxu0 0.0
        %400 = vmatprep.subr.mxu0 0.0
        %401 = vmatpush1.msra.mxu0 0.0
        %402 = vmatprep.subr.mxu0 0.0
        %403 = vmatpush1.msra.mxu0 0.0
        %404 = vmatprep.subr.mxu0 0.0
        %405 = vmatpush1.msra.mxu0 0.0
        %406 = vmatprep.subr.mxu0 0.0
        %407 = vmatpush1.msra.mxu0 0.0
        %408 = vmatprep.subr.mxu0 0.0
        %409 = vmatpush1.msra.mxu0 0.0
        %410 = vmatprep.subr.mxu0 0.0
        %411 = vmatpush1.msra.mxu0 0.0
        %412 = vmatprep.subr.mxu0 0.0
        %413 = vmatpush1.msra.mxu0 0.0
        %414 = vmatprep.subr.mxu0 0.0
        %415 = vmatpush1.msra.mxu0 0.0
        %416 = vmatprep.subr.mxu0 0.0
        %417 = vmatpush1.msra.mxu0 0.0
        %418 = vmatprep.subr.mxu0 0.0
        %419 = vmatpush1.msra.mxu0 0.0
        %420 = vmatprep.subr.mxu0 0.0
        %421 = vmatpush1.msra.mxu0 0.0
        %422 = vmatprep.subr.mxu0 0.0
        %423 = vmatpush1.msra.mxu0 0.0
        %424 = vmatprep.subr.mxu0 0.0
        %425 = vmatpush1.msra.mxu0 0.0
        %426 = vmatprep.subr.mxu0 0.0
        %427 = vmatpush1.msra.mxu0 0.0
        %428 = vmatprep.subr.mxu0 0.0
        %429 = vmatpush1.msra.mxu0 0.0
        %430 = vmatprep.subr.mxu0 0.0
        %431 = vmatpush1.msra.mxu0 0.0
        %432 = vmatprep.subr.mxu0 0.0
        %433 = vmatpush1.msra.mxu0 0.0
        %434 = vmatprep.subr.mxu0 0.0
        %435 = vmatpush1.msra.mxu0 0.0
        %436 = vmatprep.subr.mxu0 0.0
        %437 = vmatpush1.msra.mxu0 0.0
        %438 = vmatprep.subr.mxu0 0.0
        %439 = vmatpush1.msra.mxu0 0.0
        %440 = vmatprep.subr.mxu0 0.0
        %441 = vmatpush1.msra.mxu0 0.0
        %442 = vmatprep.mubr.f32.mxu0 0.0
        %443 = vmatmul.mubr.f32.gmra.mrb[0].mxu0 %v376
        %v444 = vpop.f32.mrb[0].mxu0
        %v445 = vadd.f32 %v374, %v444
        %v446 = vpop.f32.mrb[0].mxu0
        %447 = vdwg.mxu0
        %vm448 = vcmask 257024
        %449 = vst.msk [vmem:[%s278] sm:$0xf] %vm448, %v445
        %s450 = sand.u32 %s127, 1
        %s451 = scalar_lea.sflag [#allocation4], %s450
        %s452 = sand.u32 %s127, 1
        %s453 = smul.addr %s452, 4
        %s454 = scalar_lea.vmem [#allocation10], %s453
        // Predicated region
        $region53: #{tpu_custom_call.1} parent=35 // pred_check
          %p455 = pneg %p137
        $region54: #{tpu_custom_call.1} parent=35 // pred_check_branch
          %457 = sbr.rel (%p455) target = $region56
        $region55: #{tpu_custom_call.1} parent=35 // pred_region
          %s459 = ssub.s32 64, 64
          %460 = vsyncadd %s451, %s459
          %s461 = smul.addr %s25, 64
          %s462 = scalar_lea.hbm %s4, %s461
          %s464 = sshll.u32 %s454, 4
          %s465 = int_to_ptr.vmem [resolvable:$true] %s464
          %467 = dma.vmem_to_hbm [thread:$0]  %s465, 64, %s462, %s451
        $region56: #{tpu_custom_call.1} parent=35 // pred_fallthru
          _
      $region36: #{tpu_custom_call.1} parent=5 // pred_fallthru
        _
      %p468 = scmp.le.s32.totalorder 2, %s20
      // Predicated region
      $region57: #{tpu_custom_call.1} parent=5 // pred_check
        %p469 = pneg %p468
      $region58: #{tpu_custom_call.1} parent=5 // pred_check_branch
        %471 = sbr.rel (%p469) target = $region60
      $region59: #{tpu_custom_call.1} parent=5 // pred_region
        %s472 = ssub.s32 %s20, 2
        // Predicated region
        $region61: #{tpu_custom_call.1} parent=59 // pred_check
          %p473 = pneg %p143
        $region62: #{tpu_custom_call.1} parent=59 // pred_check_branch
          %475 = sbr.rel (%p473) target = $region64
        $region63: #{tpu_custom_call.1} parent=59 // pred_region
          %s476 = sand.u32 %s128, 1
          %s477 = scalar_lea.sflag [#allocation4], %s476
          %s478 = sand.u32 %s128, 1
          %s479 = smul.addr %s478, 4
          %s480 = scalar_lea.vmem [#allocation10], %s479
          %481 = dma.done %s477, 64
        $region64: #{tpu_custom_call.1} parent=59 // pred_fallthru
          _
      $region60: #{tpu_custom_call.1} parent=5 // pred_fallthru
        _
    $region6: #{tpu_custom_call.1} parent=1 // loop_footer
      %s24 = sadd.s32 1, %s20
    $region7: #{tpu_custom_call.1} parent=1 // loop_footer_branch
      %19 = sbr.rel target = $region3
    $region8: #{tpu_custom_call.1} parent=1 // loop_exit
      _
    %482 = vsyncpa [#allocation3], 1
    %s483 = scalar_lea.sflag [#allocation3], 1
    %484 = vsyncpa %s483, 1
    %485 = vsyncpa [#allocation6], 1
    %s486 = scalar_lea.sflag [#allocation6], 1
    %487 = vsyncpa %s486, 1
    %488 = vsyncpa [#allocation9], 1
    %489 = vsyncpa [#allocation4], 1
    %s490 = scalar_lea.sflag [#allocation4], 1
    %491 = vsyncpa %s490, 1

</llo_original>
